<compile_context>
chip_gen: v6e
topology: v6e:2x2x1
jax: 0.10.0
libtpu: 0.0.40
codegen_flags: <defaults>
</compile_context>

<pallas_src>
import jax
import jax.numpy as jnp
from jax.experimental import pallas as pl
from jax.experimental.pallas import tpu as pltpu

LANE = 128          # lane width (last-dim tile)
SUBLANE = 8         # f32 sublane tile (second-to-last dim)


def _round_up(x, m):
    return ((x + m - 1) // m) * m


def qnetwork_kernel(s_ref, w1_ref, b1_ref, w2_ref, b2_ref, o_ref):
    # Cast the f32 state tile to bf16 on the VPU (hidden under MXU/DMA work).
    s = s_ref[...].astype(w1_ref.dtype)
    # Hidden layer: h = relu(state @ W1 + b1) -- bf16 MXU operands, f32 accumulate.
    h = jnp.dot(s, w1_ref[...], preferred_element_type=jnp.float32)
    h = jnp.maximum(h + b1_ref[...], 0.0)            # bias + ReLU in f32 (VPU)
    # Output layer: q = h @ W2 + b2 -- cast h to bf16 for the MXU, f32 accumulate.
    q = jnp.dot(h.astype(w2_ref.dtype), w2_ref[...],
                preferred_element_type=jnp.float32)
    o_ref[...] = (q + b2_ref[...]).astype(o_ref.dtype)


def prepare_params(w1, b1, w2, b2):
    """One-time pad + bf16 cast of the parameters (call at init, reuse per step).

    w1: [state_dim, h], b1: [1, h] (or [h]), w2: [h, action_dim],
    b2: [1, action_dim] (or [action_dim]).
    """
    state_dim, h_dim = w1.shape
    action_dim = w2.shape[-1]
    h_p = _round_up(h_dim, LANE)                      # lane-dense hidden
    cdt = jnp.bfloat16                                # MXU operand dtype

    w1_p = jnp.zeros((state_dim, h_p), cdt).at[:, :h_dim].set(w1.astype(cdt))
    b1_p = jnp.zeros((1, h_p), jnp.float32).at[:, :h_dim].set(
        b1.reshape(1, h_dim).astype(jnp.float32))
    w2_p = jnp.zeros((h_p, action_dim), cdt).at[:h_dim, :].set(w2.astype(cdt))
    b2_p = b2.reshape(1, action_dim).astype(jnp.float32)
    return w1_p, b1_p, w2_p, b2_p


def _pallas_forward(state, params, tile_b, single_buffer_weights):
    w1_p, b1_p, w2_p, b2_p = params
    B, state_dim = state.shape
    h_p = w1_p.shape[1]
    action_dim = w2_p.shape[1]

    # --- batch tile selection -------------------------------------------
    if B <= tile_b:
        if B >= 2 * SUBLANE:
            # Split into >= 2 grid steps so the "parallel" axis can shard
            # across both TensorCores on v7x (no-op on v5e/v6e).
            tile_b = _round_up(pl.cdiv(B, 2), SUBLANE)
        else:
            tile_b = B        # single full-dim block (legal even if not /8)
    grid = (pl.cdiv(B, tile_b),)

    # Grid-invariant operands: constant index_map; optionally single-buffered.
    wkw = dict(pipeline_mode=pl.Buffered(1)) if single_buffer_weights else {}

    in_specs = [
        # activation tile marches over the batch; weights stay VMEM-resident
        pl.BlockSpec((tile_b, state_dim), lambda i: (i, 0)),
        pl.BlockSpec((state_dim, h_p), lambda i: (0, 0), **wkw),
        pl.BlockSpec((1, h_p), lambda i: (0, 0), **wkw),
        pl.BlockSpec((h_p, action_dim), lambda i: (0, 0), **wkw),
        pl.BlockSpec((1, action_dim), lambda i: (0, 0), **wkw),
    ]
    out_spec = pl.BlockSpec((tile_b, action_dim), lambda i: (i, 0))

    # --- scheduler hints ---------------------------------------------------
    flops = 2 * B * (state_dim * h_p + h_p * action_dim)
    bytes_accessed = (B * state_dim * 4                 # f32 state read
                      + w1_p.size * 2 + w2_p.size * 2   # bf16 weights
                      + b1_p.size * 4 + b2_p.size * 4   # f32 biases
                      + B * action_dim * 4)             # f32 output write

    weight_bytes = (w1_p.size * 2 + w2_p.size * 2
                    + b1_p.size * 4 + b2_p.size * 4)
    act_bytes = tile_b * (state_dim + action_dim) * 4
    footprint = 2 * weight_bytes + 3 * act_bytes + 4 * tile_b * h_p * 4
    vmem_limit = int(min(max(footprint, 32 * 1024 * 1024), 64 * 1024 * 1024))

    return pl.pallas_call(
        qnetwork_kernel,
        out_shape=jax.ShapeDtypeStruct((B, action_dim), jnp.float32),
        grid_spec=pltpu.PrefetchScalarGridSpec(
            num_scalar_prefetch=0,
            grid=grid,
            in_specs=in_specs,
            out_specs=out_spec,
        ),
        compiler_params=pltpu.CompilerParams(
            dimension_semantics=("parallel",),     # batch-parallel (2 TCs on v7x)
            vmem_limit_bytes=vmem_limit,
        ),
        cost_estimate=pl.CostEstimate(
            flops=flops, transcendentals=0, bytes_accessed=bytes_accessed),
    )(state.astype(jnp.float32), w1_p, b1_p, w2_p, b2_p)


def qnetwork_forward(state, params, *, tile_b=512):
    """state: [B, state_dim]; params from prepare_params(). Returns [B, action_dim]."""
    try:
        q = _pallas_forward(state, params, tile_b, single_buffer_weights=True)
    except Exception:
        # pipeline_mode=pl.Buffered(1) not supported by this jax build;
        # fall back to default double-buffered resident weights (still correct).
        q = _pallas_forward(state, params, tile_b, single_buffer_weights=False)
    return q.astype(state.dtype)


def init_params(key, state_dim, action_dim, h_layer_dim, dtype=jnp.float32):
    """Deterministic synthetic init (uniform, PyTorch-Linear-like bounds).
    Weights stored as [in, out] (transpose of nn.Linear's [out, in])."""
    k1, k2, k3, k4 = jax.random.split(key, 4)
    bound1 = 1.0 / (state_dim ** 0.5)
    bound2 = 1.0 / (h_layer_dim ** 0.5)
    w1 = jax.random.uniform(k1, (state_dim, h_layer_dim), dtype, -bound1, bound1)
    b1 = jax.random.uniform(k2, (1, h_layer_dim), dtype, -bound1, bound1)
    w2 = jax.random.uniform(k3, (h_layer_dim, action_dim), dtype, -bound2, bound2)
    b2 = jax.random.uniform(k4, (1, action_dim), dtype, -bound2, bound2)
    return w1, b1, w2, b2


def reference_forward(state, w1, b1, w2, b2):
    """Pure-JAX reference mirroring the kernel's bf16-operand / f32-accumulate math."""
    s = state.astype(jnp.bfloat16).astype(jnp.float32)
    w1f = w1.astype(jnp.bfloat16).astype(jnp.float32)
    w2f = w2.astype(jnp.bfloat16).astype(jnp.float32)
    h = jnp.maximum(s @ w1f + b1.astype(jnp.float32), 0.0)
    h = h.astype(jnp.bfloat16).astype(jnp.float32)
    return h @ w2f + b2.astype(jnp.float32)


if __name__ == "__main__":
    batch = 2
    state_dim = 16
    h_layer_dim = 32
    action_dim = 8

    key = jax.random.PRNGKey(0)
    k_state, k_params = jax.random.split(key)
    state = jax.random.normal(k_state, (batch, state_dim), jnp.float32)
    w1, b1, w2, b2 = init_params(k_params, state_dim, action_dim, h_layer_dim)

    params = prepare_params(w1, b1, w2, b2)      # one-time pad + bf16 cast
    q = qnetwork_forward(state, params)
    jax.block_until_ready(q)

    q_ref = reference_forward(state, w1, b1, w2, b2)
    assert q.shape == (batch, action_dim)
    assert jnp.allclose(q, q_ref, atol=1e-3, rtol=1e-3), (
        f"max abs err {jnp.max(jnp.abs(q - q_ref))}")

    print("KERNEL_OK")
</pallas_src>

<mosaic_0001>
module attributes {stable_mosaic.version = 11 : i64} {
  func.func @qnetwork_kernel(%arg0: i32, %arg1: memref<2x16xf32, #tpu.memory_space<vmem>>, %arg2: memref<16x128xbf16, #tpu.memory_space<vmem>>, %arg3: memref<1x128xf32, #tpu.memory_space<vmem>>, %arg4: memref<128x8xbf16, #tpu.memory_space<vmem>>, %arg5: memref<1x8xf32, #tpu.memory_space<vmem>>, %arg6: memref<2x8xf32, #tpu.memory_space<vmem>>) attributes {dimension_semantics = [#tpu.dimension_semantics<parallel>], iteration_bounds = array<i64: 1>, scalar_prefetch = 0 : i64, scratch_operands = 0 : i64, tpu.core_type = #tpu.core_type<tc>, window_params = [{transform_indices = @transform_0, window_bounds = array<i64: 2, 16>}, {pipeline_mode = #tpu.pipeline_mode<synchronous>, transform_indices = @transform_1, window_bounds = array<i64: 16, 128>}, {pipeline_mode = #tpu.pipeline_mode<synchronous>, transform_indices = @transform_2, window_bounds = array<i64: 1, 128>}, {pipeline_mode = #tpu.pipeline_mode<synchronous>, transform_indices = @transform_3, window_bounds = array<i64: 128, 8>}, {pipeline_mode = #tpu.pipeline_mode<synchronous>, transform_indices = @transform_4, window_bounds = array<i64: 1, 8>}, {transform_indices = @transform_5, window_bounds = array<i64: 2, 8>}]} {
    %c0 = arith.constant 0 : index
    %c0_0 = arith.constant 0 : index
    %0 = vector.load %arg1[%c0, %c0_0] : memref<2x16xf32, #tpu.memory_space<vmem>>, vector<2x16xf32>
    %1 = arith.truncf %0 : vector<2x16xf32> to vector<2x16xbf16>
    %c0_1 = arith.constant 0 : index
    %c0_2 = arith.constant 0 : index
    %2 = vector.load %arg2[%c0_1, %c0_2] : memref<16x128xbf16, #tpu.memory_space<vmem>>, vector<16x128xbf16>
    %cst = arith.constant dense<0.000000e+00> : vector<2x128xf32>
    %3 = tpu.matmul %1, %2, %cst {dimension_numbers = #tpu.dot_dimension_numbers<[1], [0], [0], [1], [0, 0, 1, 1], [], []>} : vector<2x16xbf16>, vector<16x128xbf16>, vector<2x128xf32> -> vector<2x128xf32>
    %c0_3 = arith.constant 0 : index
    %c0_4 = arith.constant 0 : index
    %4 = vector.load %arg3[%c0_3, %c0_4] : memref<1x128xf32, #tpu.memory_space<vmem>>, vector<1x128xf32>
    %5 = vector.broadcast %4 : vector<1x128xf32> to vector<2x128xf32>
    %6 = arith.addf %3, %5 : vector<2x128xf32>
    %cst_5 = arith.constant 0.000000e+00 : f32
    %7 = vector.broadcast %cst_5 : f32 to vector<2x128xf32>
    %8 = arith.maximumf %6, %7 : vector<2x128xf32>
    %9 = arith.truncf %8 : vector<2x128xf32> to vector<2x128xbf16>
    %c0_6 = arith.constant 0 : index
    %c0_7 = arith.constant 0 : index
    %10 = vector.load %arg4[%c0_6, %c0_7] : memref<128x8xbf16, #tpu.memory_space<vmem>>, vector<128x8xbf16>
    %cst_8 = arith.constant dense<0.000000e+00> : vector<2x8xf32>
    %11 = tpu.matmul %9, %10, %cst_8 {dimension_numbers = #tpu.dot_dimension_numbers<[1], [0], [0], [1], [0, 0, 1, 1], [], []>} : vector<2x128xbf16>, vector<128x8xbf16>, vector<2x8xf32> -> vector<2x8xf32>
    %c0_9 = arith.constant 0 : index
    %c0_10 = arith.constant 0 : index
    %12 = vector.load %arg5[%c0_9, %c0_10] : memref<1x8xf32, #tpu.memory_space<vmem>>, vector<1x8xf32>
    %13 = vector.broadcast %12 : vector<1x8xf32> to vector<2x8xf32>
    %14 = arith.addf %11, %13 : vector<2x8xf32>
    %c0_11 = arith.constant 0 : index
    %c0_12 = arith.constant 0 : index
    %15 = vector.load %arg6[%c0_11, %c0_12] : memref<2x8xf32, #tpu.memory_space<vmem>>, vector<2x8xf32>
    tpu.vector_store %arg6[%c0_11, %c0_12], %14 {strides = array<i32>} : memref<2x8xf32, #tpu.memory_space<vmem>>, vector<2x8xf32>,
    return
  }
  func.func @transform_0(%arg0: i32) -> (i32, i32) {
    %c0_i32 = arith.constant 0 : i32
    %c0_i32_0 = arith.constant 0 : i32
    return %arg0, %c0_i32 : i32, i32
  }
  func.func @transform_1(%arg0: i32) -> (i32, i32) {
    %c0_i32 = arith.constant 0 : i32
    %c0_i32_0 = arith.constant 0 : i32
    %c0_i32_1 = arith.constant 0 : i32
    return %c0_i32, %c0_i32_0 : i32, i32
  }
  func.func @transform_2(%arg0: i32) -> (i32, i32) {
    %c0_i32 = arith.constant 0 : i32
    %c0_i32_0 = arith.constant 0 : i32
    %c0_i32_1 = arith.constant 0 : i32
    return %c0_i32, %c0_i32_0 : i32, i32
  }
  func.func @transform_3(%arg0: i32) -> (i32, i32) {
    %c0_i32 = arith.constant 0 : i32
    %c0_i32_0 = arith.constant 0 : i32
    %c0_i32_1 = arith.constant 0 : i32
    return %c0_i32, %c0_i32_0 : i32, i32
  }
  func.func @transform_4(%arg0: i32) -> (i32, i32) {
    %c0_i32 = arith.constant 0 : i32
    %c0_i32_0 = arith.constant 0 : i32
    %c0_i32_1 = arith.constant 0 : i32
    return %c0_i32, %c0_i32_0 : i32, i32
  }
  func.func @transform_5(%arg0: i32) -> (i32, i32) {
    %c0_i32 = arith.constant 0 : i32
    %c0_i32_0 = arith.constant 0 : i32
    return %arg0, %c0_i32 : i32, i32
  }
}

module attributes {stable_mosaic.version = 11 : i64} {
  func.func @qnetwork_kernel(%arg0: i32, %arg1: memref<2x16xf32, #tpu.memory_space<vmem>>, %arg2: memref<16x128xbf16, #tpu.memory_space<vmem>>, %arg3: memref<1x128xf32, #tpu.memory_space<vmem>>, %arg4: memref<128x8xbf16, #tpu.memory_space<vmem>>, %arg5: memref<1x8xf32, #tpu.memory_space<vmem>>, %arg6: memref<2x8xf32, #tpu.memory_space<vmem>>) attributes {dimension_semantics = [#tpu.dimension_semantics<parallel>], iteration_bounds = array<i64: 1>, scalar_prefetch = 0 : i64, scratch_operands = 0 : i64, tpu.core_type = #tpu.core_type<tc>, window_params = [{transform_indices = @transform_0, window_bounds = array<i64: 2, 16>}, {pipeline_mode = #tpu.pipeline_mode<synchronous>, transform_indices = @transform_1, window_bounds = array<i64: 16, 128>}, {pipeline_mode = #tpu.pipeline_mode<synchronous>, transform_indices = @transform_2, window_bounds = array<i64: 1, 128>}, {pipeline_mode = #tpu.pipeline_mode<synchronous>, transform_indices = @transform_3, window_bounds = array<i64: 128, 8>}, {pipeline_mode = #tpu.pipeline_mode<synchronous>, transform_indices = @transform_4, window_bounds = array<i64: 1, 8>}, {transform_indices = @transform_5, window_bounds = array<i64: 2, 8>}]} {
    %c0 = arith.constant 0 : index
    %c0_0 = arith.constant 0 : index
    %0 = vector.load %arg1[%c0, %c0_0] : memref<2x16xf32, #tpu.memory_space<vmem>>, vector<2x16xf32>
    %1 = arith.truncf %0 : vector<2x16xf32> to vector<2x16xbf16>
    %c0_1 = arith.constant 0 : index
    %c0_2 = arith.constant 0 : index
    %2 = vector.load %arg2[%c0_1, %c0_2] : memref<16x128xbf16, #tpu.memory_space<vmem>>, vector<16x128xbf16>
    %cst = arith.constant dense<0.000000e+00> : vector<2x128xf32>
    %3 = tpu.matmul %1, %2, %cst {dimension_numbers = #tpu.dot_dimension_numbers<[1], [0], [0], [1], [0, 0, 1, 1], [], []>} : vector<2x16xbf16>, vector<16x128xbf16>, vector<2x128xf32> -> vector<2x128xf32>
    %c0_3 = arith.constant 0 : index
    %c0_4 = arith.constant 0 : index
    %4 = vector.load %arg3[%c0_3, %c0_4] : memref<1x128xf32, #tpu.memory_space<vmem>>, vector<1x128xf32>
    %5 = vector.broadcast %4 : vector<1x128xf32> to vector<2x128xf32>
    %6 = arith.addf %3, %5 : vector<2x128xf32>
    %cst_5 = arith.constant 0.000000e+00 : f32
    %7 = vector.broadcast %cst_5 : f32 to vector<2x128xf32>
    %8 = arith.maximumf %6, %7 : vector<2x128xf32>
    %9 = arith.truncf %8 : vector<2x128xf32> to vector<2x128xbf16>
    %c0_6 = arith.constant 0 : index
    %c0_7 = arith.constant 0 : index
    %10 = vector.load %arg4[%c0_6, %c0_7] : memref<128x8xbf16, #tpu.memory_space<vmem>>, vector<128x8xbf16>
    %cst_8 = arith.constant dense<0.000000e+00> : vector<2x8xf32>
    %11 = tpu.matmul %9, %10, %cst_8 {dimension_numbers = #tpu.dot_dimension_numbers<[1], [0], [0], [1], [0, 0, 1, 1], [], []>} : vector<2x128xbf16>, vector<128x8xbf16>, vector<2x8xf32> -> vector<2x8xf32>
    %c0_9 = arith.constant 0 : index
    %c0_10 = arith.constant 0 : index
    %12 = vector.load %arg5[%c0_9, %c0_10] : memref<1x8xf32, #tpu.memory_space<vmem>>, vector<1x8xf32>
    %13 = vector.broadcast %12 : vector<1x8xf32> to vector<2x8xf32>
    %14 = arith.addf %11, %13 : vector<2x8xf32>
    %c0_11 = arith.constant 0 : index
    %c0_12 = arith.constant 0 : index
    %15 = vector.load %arg6[%c0_11, %c0_12] : memref<2x8xf32, #tpu.memory_space<vmem>>, vector<2x8xf32>
    tpu.vector_store %arg6[%c0_11, %c0_12], %14 {strides = array<i32>} : memref<2x8xf32, #tpu.memory_space<vmem>>, vector<2x8xf32>,
    return
  }
  func.func @transform_0(%arg0: i32) -> (i32, i32) {
    %c0_i32 = arith.constant 0 : i32
    %c0_i32_0 = arith.constant 0 : i32
    return %arg0, %c0_i32 : i32, i32
  }
  func.func @transform_1(%arg0: i32) -> (i32, i32) {
    %c0_i32 = arith.constant 0 : i32
    %c0_i32_0 = arith.constant 0 : i32
    %c0_i32_1 = arith.constant 0 : i32
    return %c0_i32, %c0_i32_0 : i32, i32
  }
  func.func @transform_2(%arg0: i32) -> (i32, i32) {
    %c0_i32 = arith.constant 0 : i32
    %c0_i32_0 = arith.constant 0 : i32
    %c0_i32_1 = arith.constant 0 : i32
    return %c0_i32, %c0_i32_0 : i32, i32
  }
  func.func @transform_3(%arg0: i32) -> (i32, i32) {
    %c0_i32 = arith.constant 0 : i32
    %c0_i32_0 = arith.constant 0 : i32
    %c0_i32_1 = arith.constant 0 : i32
    return %c0_i32, %c0_i32_0 : i32, i32
  }
  func.func @transform_4(%arg0: i32) -> (i32, i32) {
    %c0_i32 = arith.constant 0 : i32
    %c0_i32_0 = arith.constant 0 : i32
    %c0_i32_1 = arith.constant 0 : i32
    return %c0_i32, %c0_i32_0 : i32, i32
  }
  func.func @transform_5(%arg0: i32) -> (i32, i32) {
    %c0_i32 = arith.constant 0 : i32
    %c0_i32_0 = arith.constant 0 : i32
    return %arg0, %c0_i32 : i32, i32
  }
}

</mosaic_0001>

<llo_original>
// kernel: tpu_custom_call.1
$region0: #{tpu_custom_call.1}
  #allocation0 [shape = 'u32[]', space=smem, size = 0x4, offset = 0x4, fixed_abs, tag = 'smem constant byte address 0x4 - core index']
  #allocation1 [shape = 'u32[144,128]{1,0:T(1,128)}', space=vmem, size = 0x12000, scoped, tag = 'internal scratch']
  %s0 = inlined_call_operand.vmem [shape: f32[2,16], index: 0, kind: input, shape index: {}]
  %s1 = inlined_call_operand.vmem [shape: bf16[16,128], index: 1, kind: input, shape index: {}]
  %s2 = inlined_call_operand.vmem [shape: f32[1,128], index: 2, kind: input, shape index: {}]
  %s3 = inlined_call_operand.vmem [shape: bf16[128,8], index: 3, kind: input, shape index: {}]
  %s4 = inlined_call_operand.vmem [shape: f32[1,8], index: 4, kind: input, shape index: {}]
  %s5 = inlined_call_operand.hbm [shape: f32[2,8], index: 5, kind: output, shape index: {}]
  %s6 = sld [smem:[#allocation0]]
  $region30: #{tpu_custom_call.1} parent=0
    _
  %s8 = ssub.s32 1, %s6
  %s9 = scalar_select 0, %s8, %s6
  $region1: #{tpu_custom_call.1} parent=0
    #allocation2 [shape = 'u8[1024]{0}', space=vmem, size = 0x400, scoped, tag = 'output window, operand 0, single buffered']
    #allocation3 [shape = 's32[1]{0}', space=sflag, size = 0x4, scoped, tag = 'scoped memory for tpu_custom_call.1']
    %10 = vsyncpa [#allocation3], 0
    // Predicated region
    $region2: #{tpu_custom_call.1} parent=1 // pred_check
      _
    $region3: #{tpu_custom_call.1} parent=1 // pred_check_branch
      %12 = sbr.rel (0) target = $region5
    $region4: #{tpu_custom_call.1} parent=1 // pred_region
      _
    $region5: #{tpu_custom_call.1} parent=1 // pred_fallthru
      _
    // Predicated region
    $region6: #{tpu_custom_call.1} parent=1 // pred_check
      _
    $region7: #{tpu_custom_call.1} parent=1 // pred_check_branch
      %14 = sbr.rel (0) target = $region9
    $region8: #{tpu_custom_call.1} parent=1 // pred_region
      _
    $region9: #{tpu_custom_call.1} parent=1 // pred_fallthru
      _
    // Predicated region
    $region10: #{tpu_custom_call.1} parent=1 // pred_check
      _
    $region11: #{tpu_custom_call.1} parent=1 // pred_check_branch
      %16 = sbr.rel (0) target = $region13
    $region12: #{tpu_custom_call.1} parent=1 // pred_region
      _
    $region13: #{tpu_custom_call.1} parent=1 // pred_fallthru
      _
    // Predicated region
    $region14: #{tpu_custom_call.1} parent=1 // pred_check
      _
    $region15: #{tpu_custom_call.1} parent=1 // pred_check_branch
      %18 = sbr.rel (0) target = $region17
    $region16: #{tpu_custom_call.1} parent=1 // pred_region
      _
    $region17: #{tpu_custom_call.1} parent=1 // pred_fallthru
      _
    // Predicated region
    $region18: #{tpu_custom_call.1} parent=1 // pred_check
      _
    $region19: #{tpu_custom_call.1} parent=1 // pred_check_branch
      %20 = sbr.rel (0) target = $region21
    $region20: #{tpu_custom_call.1} parent=1 // pred_region
      _
    $region21: #{tpu_custom_call.1} parent=1 // pred_fallthru
      _
    %v22 = vld [vmem:[%s0] sm:$0x3]
    %v23 = vpack.c.bf16 %v22, %v22
    %v24 = vld [vmem:[%s1] sm:$0xf]
    %v25 = vld [vmem:[%s1 + $0x4] sm:$0xf]
    %v26 = vld [vmem:[%s2] sm:$0x1]
    %v28 = vlaneseq
    %v29 = vshrl.u32 %v28, 7
    %v30 = vsub.s32 0, %v29
    %v31 = vrot.slane %v26, %v30
    %v35 = vunpack.c.l.b16 %v24
    %v36 = vunpack.c.l.b16 %v25
    %v37 = vpack.c.b16 %v36, %v35
    %vm39 = vcmask 130048
    %v41 = vsel %vm39, %v23, 0
    %43 = vmatprep.subr.bf16.mxu0 0
    %44 = vmatpush1.bf16.msra.mxu0 0
    %45 = vmatprep.subr.bf16.mxu0 0
    %46 = vmatpush1.bf16.msra.mxu0 0
    %47 = vmatprep.subr.bf16.mxu0 0
    %48 = vmatpush1.bf16.msra.mxu0 0
    %49 = vmatprep.subr.bf16.mxu0 0
    %50 = vmatpush1.bf16.msra.mxu0 0
    %51 = vmatprep.subr.bf16.mxu0 0
    %52 = vmatpush1.bf16.msra.mxu0 0
    %53 = vmatprep.subr.bf16.mxu0 0
    %54 = vmatpush1.bf16.msra.mxu0 0
    %55 = vmatprep.subr.bf16.mxu0 0
    %56 = vmatpush1.bf16.msra.mxu0 0
    %57 = vmatprep.subr.bf16.mxu0 0
    %58 = vmatpush1.bf16.msra.mxu0 %v37
    %59 = vmatprep.subr.bf16.mxu0 0
    %60 = vmatpush2.bf16.msra.mxu0 0
    %61 = vmatprep.subr.bf16.mxu0 0
    %62 = vmatpush2.bf16.msra.mxu0 0
    %63 = vmatprep.subr.bf16.mxu0 0
    %64 = vmatpush2.bf16.msra.mxu0 0
    %65 = vmatprep.subr.bf16.mxu0 0
    %66 = vmatpush2.bf16.msra.mxu0 0
    %67 = vmatprep.subr.bf16.mxu0 0
    %68 = vmatpush2.bf16.msra.mxu0 0
    %69 = vmatprep.subr.bf16.mxu0 0
    %70 = vmatpush2.bf16.msra.mxu0 0
    %71 = vmatprep.subr.bf16.mxu0 0
    %72 = vmatpush2.bf16.msra.mxu0 0
    %73 = vmatprep.subr.bf16.mxu0 0
    %74 = vmatpush2.bf16.msra.mxu0 0
    %75 = vmatprep.mubr.bf16.mxu0 0
    %76 = vmatmul.mubr.bf16.gmra.mxu0 %v41
    %v77 = vpop.f32.mrf.mxu0
    %v78 = vadd.f32 %v31, %v77
    %v79 = vpop.f32.mrf.mxu0
    %v80 = vpop.f32.mrf.mxu0
    %v81 = vpop.f32.mrf.mxu0
    %82 = vdwg.mxu0
    %v83 = vmax.f32 %v78, 0.0
    %v84 = vpack.c.bf16 %v83, %v83
    %v85 = vld [vmem:[%s3] sm:$0xf]
    %v86 = vld [vmem:[%s3 + $0x4] sm:$0xf]
    %v87 = vld [vmem:[%s3 + $0x8] sm:$0xf]
    %v88 = vld [vmem:[%s3 + $0xc] sm:$0xf]
    %v89 = vld [vmem:[%s3 + $0x10] sm:$0xf]
    %v90 = vld [vmem:[%s3 + $0x14] sm:$0xf]
    %v91 = vld [vmem:[%s3 + $0x18] sm:$0xf]
    %v92 = vld [vmem:[%s3 + $0x1c] sm:$0xf]
    %v93 = vld [vmem:[%s3 + $0x20] sm:$0xf]
    %v94 = vld [vmem:[%s3 + $0x24] sm:$0xf]
    %v95 = vld [vmem:[%s3 + $0x28] sm:$0xf]
    %v96 = vld [vmem:[%s3 + $0x2c] sm:$0xf]
    %v97 = vld [vmem:[%s3 + $0x30] sm:$0xf]
    %v98 = vld [vmem:[%s3 + $0x34] sm:$0xf]
    %v99 = vld [vmem:[%s3 + $0x38] sm:$0xf]
    %v100 = vld [vmem:[%s3 + $0x3c] sm:$0xf]
    %v101 = vld [vmem:[%s4] sm:$0x1]
    %v103 = vlaneseq
    %v104 = vshrl.u32 %v103, 7
    %v105 = vsub.s32 0, %v104
    %v106 = vrot.slane %v101, %v105
    %v124 = vunpack.c.l.b16 %v85
    %v125 = vunpack.c.l.b16 %v86
    %v126 = vunpack.c.l.b16 %v87
    %v127 = vunpack.c.l.b16 %v88
    %v128 = vunpack.c.l.b16 %v89
    %v129 = vunpack.c.l.b16 %v90
    %v130 = vunpack.c.l.b16 %v91
    %v131 = vunpack.c.l.b16 %v92
    %v132 = vunpack.c.l.b16 %v93
    %v133 = vunpack.c.l.b16 %v94
    %v134 = vunpack.c.l.b16 %v95
    %v135 = vunpack.c.l.b16 %v96
    %v136 = vunpack.c.l.b16 %v97
    %v137 = vunpack.c.l.b16 %v98
    %v138 = vunpack.c.l.b16 %v99
    %v139 = vunpack.c.l.b16 %v100
    %v140 = vpack.c.b16 %v125, %v124
    %v141 = vpack.c.b16 %v127, %v126
    %v142 = vpack.c.b16 %v129, %v128
    %v143 = vpack.c.b16 %v131, %v130
    %v144 = vpack.c.b16 %v133, %v132
    %v145 = vpack.c.b16 %v135, %v134
    %v146 = vpack.c.b16 %v137, %v136
    %v147 = vpack.c.b16 %v139, %v138
    %156 = vmatprep.subr.bf16.mxu0 0
    %157 = vmatpush1.bf16.msra.mxu0 %v147
    %158 = vmatprep.subr.bf16.mxu0 0
    %159 = vmatpush1.bf16.msra.mxu0 %v146
    %160 = vmatprep.subr.bf16.mxu0 0
    %161 = vmatpush1.bf16.msra.mxu0 %v145
    %162 = vmatprep.subr.bf16.mxu0 0
    %163 = vmatpush1.bf16.msra.mxu0 %v144
    %164 = vmatprep.subr.bf16.mxu0 0
    %165 = vmatpush1.bf16.msra.mxu0 %v143
    %166 = vmatprep.subr.bf16.mxu0 0
    %167 = vmatpush1.bf16.msra.mxu0 %v142
    %168 = vmatprep.subr.bf16.mxu0 0
    %169 = vmatpush1.bf16.msra.mxu0 %v141
    %170 = vmatprep.subr.bf16.mxu0 0
    %171 = vmatpush1.bf16.msra.mxu0 %v140
    %172 = vmatprep.subr.bf16.mxu0 0
    %173 = vmatpush2.bf16.msra.mxu0 0
    %174 = vmatprep.subr.bf16.mxu0 0
    %175 = vmatpush2.bf16.msra.mxu0 0
    %176 = vmatprep.subr.bf16.mxu0 0
    %177 = vmatpush2.bf16.msra.mxu0 0
    %178 = vmatprep.subr.bf16.mxu0 0
    %179 = vmatpush2.bf16.msra.mxu0 0
    %180 = vmatprep.subr.bf16.mxu0 0
    %181 = vmatpush2.bf16.msra.mxu0 0
    %182 = vmatprep.subr.bf16.mxu0 0
    %183 = vmatpush2.bf16.msra.mxu0 0
    %184 = vmatprep.subr.bf16.mxu0 0
    %185 = vmatpush2.bf16.msra.mxu0 0
    %186 = vmatprep.subr.bf16.mxu0 0
    %187 = vmatpush2.bf16.msra.mxu0 0
    %188 = vmatprep.mubr.bf16.mxu0 0
    %189 = vmatmul.mubr.bf16.gmra.mxu0 %v84
    %v190 = vpop.f32.mrf.mxu0
    %v191 = vadd.f32 %v106, %v190
    %v192 = vpop.f32.mrf.mxu0
    %v193 = vpop.f32.mrf.mxu0
    %v194 = vpop.f32.mrf.mxu0
    %195 = vdwg.mxu0
    %vm196 = vcmask 58368
    %197 = vst.msk [vmem:[#allocation2] sm:$0x3] %vm196, %v191
    // Predicated region
    $region22: #{tpu_custom_call.1} parent=1 // pred_check
      _
    $region23: #{tpu_custom_call.1} parent=1 // pred_check_branch
      %199 = sbr.rel (0) target = $region25
    $region24: #{tpu_custom_call.1} parent=1 // pred_region
      %s201 = ssub.s32 32, 32
      %202 = vsyncadd [#allocation3], %s201
      %s204 = sshll.u32 [#allocation2], 4
      %s205 = int_to_ptr.vmem [resolvable:$true] %s204
      %207 = dma.vmem_to_hbm [thread:$0]  %s205, 32, %s5, [#allocation3]
    $region25: #{tpu_custom_call.1} parent=1 // pred_fallthru
      _
    // Predicated region
    $region26: #{tpu_custom_call.1} parent=1 // pred_check
      _
    $region27: #{tpu_custom_call.1} parent=1 // pred_check_branch
      %209 = sbr.rel (0) target = $region29
    $region28: #{tpu_custom_call.1} parent=1 // pred_region
      %210 = dma.done [#allocation3], 32
    $region29: #{tpu_custom_call.1} parent=1 // pred_fallthru
      _
    %211 = vsyncpa [#allocation3], 1

// kernel: tpu_custom_call.1
$region0: #{tpu_custom_call.1}
  #allocation0 [shape = 'u32[]', space=smem, size = 0x4, offset = 0x4, fixed_abs, tag = 'smem constant byte address 0x4 - core index']
  #allocation1 [shape = 'u32[144,128]{1,0:T(1,128)}', space=vmem, size = 0x12000, scoped, tag = 'internal scratch']
  %s0 = inlined_call_operand.vmem [shape: f32[2,16], index: 0, kind: input, shape index: {}]
  %s1 = inlined_call_operand.vmem [shape: bf16[16,128], index: 1, kind: input, shape index: {}]
  %s2 = inlined_call_operand.vmem [shape: f32[1,128], index: 2, kind: input, shape index: {}]
  %s3 = inlined_call_operand.vmem [shape: bf16[128,8], index: 3, kind: input, shape index: {}]
  %s4 = inlined_call_operand.vmem [shape: f32[1,8], index: 4, kind: input, shape index: {}]
  %s5 = inlined_call_operand.hbm [shape: f32[2,8], index: 5, kind: output, shape index: {}]
  %s6 = sld [smem:[#allocation0]]
  $region30: #{tpu_custom_call.1} parent=0
    _
  %s8 = ssub.s32 1, %s6
  %s9 = scalar_select 0, %s8, %s6
  $region1: #{tpu_custom_call.1} parent=0
    #allocation2 [shape = 'u8[1024]{0}', space=vmem, size = 0x400, scoped, tag = 'output window, operand 0, single buffered']
    #allocation3 [shape = 's32[1]{0}', space=sflag, size = 0x4, scoped, tag = 'scoped memory for tpu_custom_call.1']
    %10 = vsyncpa [#allocation3], 0
    // Predicated region
    $region2: #{tpu_custom_call.1} parent=1 // pred_check
      _
    $region3: #{tpu_custom_call.1} parent=1 // pred_check_branch
      %12 = sbr.rel (0) target = $region5
    $region4: #{tpu_custom_call.1} parent=1 // pred_region
      _
    $region5: #{tpu_custom_call.1} parent=1 // pred_fallthru
      _
    // Predicated region
    $region6: #{tpu_custom_call.1} parent=1 // pred_check
      _
    $region7: #{tpu_custom_call.1} parent=1 // pred_check_branch
      %14 = sbr.rel (0) target = $region9
    $region8: #{tpu_custom_call.1} parent=1 // pred_region
      _
    $region9: #{tpu_custom_call.1} parent=1 // pred_fallthru
      _
    // Predicated region
    $region10: #{tpu_custom_call.1} parent=1 // pred_check
      _
    $region11: #{tpu_custom_call.1} parent=1 // pred_check_branch
      %16 = sbr.rel (0) target = $region13
    $region12: #{tpu_custom_call.1} parent=1 // pred_region
      _
    $region13: #{tpu_custom_call.1} parent=1 // pred_fallthru
      _
    // Predicated region
    $region14: #{tpu_custom_call.1} parent=1 // pred_check
      _
    $region15: #{tpu_custom_call.1} parent=1 // pred_check_branch
      %18 = sbr.rel (0) target = $region17
    $region16: #{tpu_custom_call.1} parent=1 // pred_region
      _
    $region17: #{tpu_custom_call.1} parent=1 // pred_fallthru
      _
    // Predicated region
    $region18: #{tpu_custom_call.1} parent=1 // pred_check
      _
    $region19: #{tpu_custom_call.1} parent=1 // pred_check_branch
      %20 = sbr.rel (0) target = $region21
    $region20: #{tpu_custom_call.1} parent=1 // pred_region
      _
    $region21: #{tpu_custom_call.1} parent=1 // pred_fallthru
      _
    %v22 = vld [vmem:[%s0] sm:$0x3]
    %v23 = vpack.c.bf16 %v22, %v22
    %v24 = vld [vmem:[%s1] sm:$0xf]
    %v25 = vld [vmem:[%s1 + $0x4] sm:$0xf]
    %v26 = vld [vmem:[%s2] sm:$0x1]
    %v28 = vlaneseq
    %v29 = vshrl.u32 %v28, 7
    %v30 = vsub.s32 0, %v29
    %v31 = vrot.slane %v26, %v30
    %v35 = vunpack.c.l.b16 %v24
    %v36 = vunpack.c.l.b16 %v25
    %v37 = vpack.c.b16 %v36, %v35
    %vm39 = vcmask 130048
    %v41 = vsel %vm39, %v23, 0
    %43 = vmatprep.subr.bf16.mxu0 0
    %44 = vmatpush1.bf16.msra.mxu0 0
    %45 = vmatprep.subr.bf16.mxu0 0
    %46 = vmatpush1.bf16.msra.mxu0 0
    %47 = vmatprep.subr.bf16.mxu0 0
    %48 = vmatpush1.bf16.msra.mxu0 0
    %49 = vmatprep.subr.bf16.mxu0 0
    %50 = vmatpush1.bf16.msra.mxu0 0
    %51 = vmatprep.subr.bf16.mxu0 0
    %52 = vmatpush1.bf16.msra.mxu0 0
    %53 = vmatprep.subr.bf16.mxu0 0
    %54 = vmatpush1.bf16.msra.mxu0 0
    %55 = vmatprep.subr.bf16.mxu0 0
    %56 = vmatpush1.bf16.msra.mxu0 0
    %57 = vmatprep.subr.bf16.mxu0 0
    %58 = vmatpush1.bf16.msra.mxu0 %v37
    %59 = vmatprep.subr.bf16.mxu0 0
    %60 = vmatpush2.bf16.msra.mxu0 0
    %61 = vmatprep.subr.bf16.mxu0 0
    %62 = vmatpush2.bf16.msra.mxu0 0
    %63 = vmatprep.subr.bf16.mxu0 0
    %64 = vmatpush2.bf16.msra.mxu0 0
    %65 = vmatprep.subr.bf16.mxu0 0
    %66 = vmatpush2.bf16.msra.mxu0 0
    %67 = vmatprep.subr.bf16.mxu0 0
    %68 = vmatpush2.bf16.msra.mxu0 0
    %69 = vmatprep.subr.bf16.mxu0 0
    %70 = vmatpush2.bf16.msra.mxu0 0
    %71 = vmatprep.subr.bf16.mxu0 0
    %72 = vmatpush2.bf16.msra.mxu0 0
    %73 = vmatprep.subr.bf16.mxu0 0
    %74 = vmatpush2.bf16.msra.mxu0 0
    %75 = vmatprep.mubr.bf16.mxu0 0
    %76 = vmatmul.mubr.bf16.gmra.mxu0 %v41
    %v77 = vpop.f32.mrf.mxu0
    %v78 = vadd.f32 %v31, %v77
    %v79 = vpop.f32.mrf.mxu0
    %v80 = vpop.f32.mrf.mxu0
    %v81 = vpop.f32.mrf.mxu0
    %82 = vdwg.mxu0
    %v83 = vmax.f32 %v78, 0.0
    %v84 = vpack.c.bf16 %v83, %v83
    %v85 = vld [vmem:[%s3] sm:$0xf]
    %v86 = vld [vmem:[%s3 + $0x4] sm:$0xf]
    %v87 = vld [vmem:[%s3 + $0x8] sm:$0xf]
    %v88 = vld [vmem:[%s3 + $0xc] sm:$0xf]
    %v89 = vld [vmem:[%s3 + $0x10] sm:$0xf]
    %v90 = vld [vmem:[%s3 + $0x14] sm:$0xf]
    %v91 = vld [vmem:[%s3 + $0x18] sm:$0xf]
    %v92 = vld [vmem:[%s3 + $0x1c] sm:$0xf]
    %v93 = vld [vmem:[%s3 + $0x20] sm:$0xf]
    %v94 = vld [vmem:[%s3 + $0x24] sm:$0xf]
    %v95 = vld [vmem:[%s3 + $0x28] sm:$0xf]
    %v96 = vld [vmem:[%s3 + $0x2c] sm:$0xf]
    %v97 = vld [vmem:[%s3 + $0x30] sm:$0xf]
    %v98 = vld [vmem:[%s3 + $0x34] sm:$0xf]
    %v99 = vld [vmem:[%s3 + $0x38] sm:$0xf]
    %v100 = vld [vmem:[%s3 + $0x3c] sm:$0xf]
    %v101 = vld [vmem:[%s4] sm:$0x1]
    %v103 = vlaneseq
    %v104 = vshrl.u32 %v103, 7
    %v105 = vsub.s32 0, %v104
    %v106 = vrot.slane %v101, %v105
    %v124 = vunpack.c.l.b16 %v85
    %v125 = vunpack.c.l.b16 %v86
    %v126 = vunpack.c.l.b16 %v87
    %v127 = vunpack.c.l.b16 %v88
    %v128 = vunpack.c.l.b16 %v89
    %v129 = vunpack.c.l.b16 %v90
    %v130 = vunpack.c.l.b16 %v91
    %v131 = vunpack.c.l.b16 %v92
    %v132 = vunpack.c.l.b16 %v93
    %v133 = vunpack.c.l.b16 %v94
    %v134 = vunpack.c.l.b16 %v95
    %v135 = vunpack.c.l.b16 %v96
    %v136 = vunpack.c.l.b16 %v97
    %v137 = vunpack.c.l.b16 %v98
    %v138 = vunpack.c.l.b16 %v99
    %v139 = vunpack.c.l.b16 %v100
    %v140 = vpack.c.b16 %v125, %v124
    %v141 = vpack.c.b16 %v127, %v126
    %v142 = vpack.c.b16 %v129, %v128
    %v143 = vpack.c.b16 %v131, %v130
    %v144 = vpack.c.b16 %v133, %v132
    %v145 = vpack.c.b16 %v135, %v134
    %v146 = vpack.c.b16 %v137, %v136
    %v147 = vpack.c.b16 %v139, %v138
    %156 = vmatprep.subr.bf16.mxu0 0
    %157 = vmatpush1.bf16.msra.mxu0 %v147
    %158 = vmatprep.subr.bf16.mxu0 0
    %159 = vmatpush1.bf16.msra.mxu0 %v146
    %160 = vmatprep.subr.bf16.mxu0 0
    %161 = vmatpush1.bf16.msra.mxu0 %v145
    %162 = vmatprep.subr.bf16.mxu0 0
    %163 = vmatpush1.bf16.msra.mxu0 %v144
    %164 = vmatprep.subr.bf16.mxu0 0
    %165 = vmatpush1.bf16.msra.mxu0 %v143
    %166 = vmatprep.subr.bf16.mxu0 0
    %167 = vmatpush1.bf16.msra.mxu0 %v142
    %168 = vmatprep.subr.bf16.mxu0 0
    %169 = vmatpush1.bf16.msra.mxu0 %v141
    %170 = vmatprep.subr.bf16.mxu0 0
    %171 = vmatpush1.bf16.msra.mxu0 %v140
    %172 = vmatprep.subr.bf16.mxu0 0
    %173 = vmatpush2.bf16.msra.mxu0 0
    %174 = vmatprep.subr.bf16.mxu0 0
    %175 = vmatpush2.bf16.msra.mxu0 0
    %176 = vmatprep.subr.bf16.mxu0 0
    %177 = vmatpush2.bf16.msra.mxu0 0
    %178 = vmatprep.subr.bf16.mxu0 0
    %179 = vmatpush2.bf16.msra.mxu0 0
    %180 = vmatprep.subr.bf16.mxu0 0
    %181 = vmatpush2.bf16.msra.mxu0 0
    %182 = vmatprep.subr.bf16.mxu0 0
    %183 = vmatpush2.bf16.msra.mxu0 0
    %184 = vmatprep.subr.bf16.mxu0 0
    %185 = vmatpush2.bf16.msra.mxu0 0
    %186 = vmatprep.subr.bf16.mxu0 0
    %187 = vmatpush2.bf16.msra.mxu0 0
    %188 = vmatprep.mubr.bf16.mxu0 0
    %189 = vmatmul.mubr.bf16.gmra.mxu0 %v84
    %v190 = vpop.f32.mrf.mxu0
    %v191 = vadd.f32 %v106, %v190
    %v192 = vpop.f32.mrf.mxu0
    %v193 = vpop.f32.mrf.mxu0
    %v194 = vpop.f32.mrf.mxu0
    %195 = vdwg.mxu0
    %vm196 = vcmask 58368
    %197 = vst.msk [vmem:[#allocation2] sm:$0x3] %vm196, %v191
    // Predicated region
    $region22: #{tpu_custom_call.1} parent=1 // pred_check
      _
    $region23: #{tpu_custom_call.1} parent=1 // pred_check_branch
      %199 = sbr.rel (0) target = $region25
    $region24: #{tpu_custom_call.1} parent=1 // pred_region
      %s201 = ssub.s32 32, 32
      %202 = vsyncadd [#allocation3], %s201
      %s204 = sshll.u32 [#allocation2], 4
      %s205 = int_to_ptr.vmem [resolvable:$true] %s204
      %207 = dma.vmem_to_hbm [thread:$0]  %s205, 32, %s5, [#allocation3]
    $region25: #{tpu_custom_call.1} parent=1 // pred_fallthru
      _
    // Predicated region
    $region26: #{tpu_custom_call.1} parent=1 // pred_check
      _
    $region27: #{tpu_custom_call.1} parent=1 // pred_check_branch
      %209 = sbr.rel (0) target = $region29
    $region28: #{tpu_custom_call.1} parent=1 // pred_region
      %210 = dma.done [#allocation3], 32
    $region29: #{tpu_custom_call.1} parent=1 // pred_fallthru
      _
    %211 = vsyncpa [#allocation3], 1

</llo_original>
